<compile_context>
chip_gen: v7x
topology: tpu7x:2x2x1
jax: 0.10.0
libtpu: 0.0.40
codegen_flags: <defaults>
</compile_context>

<pallas_src>
import functools

import jax
import jax.numpy as jnp
from jax.experimental import pallas as pl
from jax.experimental.pallas import tpu as pltpu

LANE = 128
SUBLANE = 8
TM_MAX = 1024  # rows per grid step -> 512 KiB f32 per input block (fits v5e/v6e/v7x VMEM easily)


def _focal_loss_kernel(pred_ref, gt_ref, out_ref, *, tm, m_valid, need_mask):
    """One grid step: focal-loss terms on a (tm, 128) block, reduced to two
    per-block partial sums (loss = pos_loss + neg_loss folded, and num_pos),
    written as a single lane-dense (1, 1, 128) row: lane 0 = loss, lane 1 = npos.
    """
    pred = pred_ref[...].astype(jnp.float32)
    gt = gt_ref[...].astype(jnp.float32)

    is_pos = gt == 1.0

    # Single log per element: pos/neg indicators are mutually exclusive, so
    # select the log argument instead of computing log(pred) AND log(1-pred).
    log_t = jnp.log(jnp.where(is_pos, pred, 1.0 - pred))

    one_m_pred = 1.0 - pred
    one_m_gt = 1.0 - gt
    neg_w = one_m_gt * one_m_gt
    neg_w = neg_w * neg_w  # (1 - gt) ** 4

    pos_term = log_t * (one_m_pred * one_m_pred)
    neg_term = log_t * (pred * pred) * neg_w

    # gt > 1 contributes to neither term (matches gt.eq(1) / gt.lt(1)).
    loss_elem = jnp.where(is_pos, pos_term, jnp.where(gt < 1.0, neg_term, 0.0))
    pos_elem = is_pos.astype(jnp.float32)

    if need_mask:
        # Only when the last grid step reads past the end of the array: those
        # rows hold stale VMEM garbage and must be masked out.
        row = pl.program_id(0) * tm + jax.lax.broadcasted_iota(
            jnp.int32, pred.shape, 0
        )
        valid = row < m_valid
        loss_elem = jnp.where(valid, loss_elem, 0.0)
        pos_elem = jnp.where(valid, pos_elem, 0.0)

    loss_blk = jnp.sum(loss_elem)
    npos_blk = jnp.sum(pos_elem)

    lane = jax.lax.broadcasted_iota(jnp.int32, (1, 1, LANE), 2)
    out_ref[...] = jnp.where(
        lane == 0, loss_blk, jnp.where(lane == 1, npos_blk, 0.0)
    )


def focal_loss(pred, gt, weights_list=None):
    """Equivalent of FocalLoss().forward(pred, gt, weights_list).

    pred, gt: (B, C, H, W) arrays (f32 or bf16; pred values expected in (0, 1)).
    Returns a scalar float32 loss.
    """
    if weights_list is not None:
        # TODO(synk): per-channel weights (channel_weights) path not implemented.
        raise NotImplementedError("weights_list path not implemented")

    n = pred.size
    pred_f = jnp.ravel(pred)  # contiguous reshape: free, keeps native dtype
    gt_f = jnp.ravel(gt)

    # Zero padding is exactly neutral for this loss (gt=0, pred=0 -> both terms 0,
    # num_pos += 0), so pad only when the flat size is not a multiple of 8*128.
    # For typical NCHW heatmaps this is a no-op => no extra HBM copy.
    row_elems = SUBLANE * LANE
    pad = (-n) % row_elems
    if pad:
        pred_f = jnp.pad(pred_f, (0, pad))
        gt_f = jnp.pad(gt_f, (0, pad))

    m = (n + pad) // LANE          # rows of 128 lanes; multiple of 8
    tm = min(TM_MAX, m)            # block rows; multiple of 8; tm <= m
    grid_len = pl.cdiv(m, tm)
    need_mask = (m % tm) != 0      # only the ragged last block needs masking

    pred2 = pred_f.reshape(m, LANE)
    gt2 = gt_f.reshape(m, LANE)

    in_spec = pl.BlockSpec((tm, LANE), lambda i: (i, 0))
    out_spec = pl.BlockSpec((1, 1, LANE), lambda i: (i, 0, 0))

    kernel = functools.partial(
        _focal_loss_kernel, tm=tm, m_valid=m, need_mask=need_mask
    )

    partial_sums = pl.pallas_call(
        kernel,
        out_shape=jax.ShapeDtypeStruct((grid_len, 1, LANE), jnp.float32),
        grid=(grid_len,),
        in_specs=[in_spec, in_spec],
        out_specs=out_spec,
        compiler_params=pltpu.CompilerParams(
            dimension_semantics=("parallel",)  # shards grid across both TCs on v7x
        ),
    )(pred2, gt2)

    loss_sum = jnp.sum(partial_sums[:, 0, 0])  # pos_loss + neg_loss
    num_pos = jnp.sum(partial_sums[:, 0, 1])

    # PyTorch: if num_pos > 2: loss = -(pos+neg)/num_pos else loss = 0
    return jnp.where(
        num_pos > 2.0,
        -loss_sum / jnp.maximum(num_pos, 1.0),
        jnp.float32(0.0),
    )


def _focal_loss_ref(pred, gt):
    """Pure-JAX reference (mirrors the PyTorch _neg_loss with weights=None)."""
    pred = pred.astype(jnp.float32)
    gt = gt.astype(jnp.float32)
    pos_inds = (gt == 1.0).astype(jnp.float32)
    neg_inds = (gt < 1.0).astype(jnp.float32)
    neg_weights = (1.0 - gt) ** 4
    pos_loss = jnp.sum(jnp.log(pred) * (1.0 - pred) ** 2 * pos_inds)
    neg_loss = jnp.sum(jnp.log(1.0 - pred) * pred**2 * neg_weights * neg_inds)
    num_pos = jnp.sum(pos_inds)
    return jnp.where(
        num_pos > 2.0,
        -(pos_loss + neg_loss) / jnp.maximum(num_pos, 1.0),
        jnp.float32(0.0),
    )


if __name__ == "__main__":
    key = jax.random.PRNGKey(0)
    k1, k2 = jax.random.split(key, 2)

    B, C, H, W = 2, 4, 16, 16
    # pred: sigmoid activations in (0, 1), as upstream of this loss in condlane.
    pred = jax.nn.sigmoid(jax.random.normal(k1, (B, C, H, W), jnp.float32))
    # gt: gaussian-heatmap-like target with some exact 1s (positive centers).
    u = jax.random.uniform(k2, (B, C, H, W), jnp.float32)
    gt = jnp.where(u > 0.97, 1.0, u * 0.9)

    loss = jax.jit(focal_loss)(pred, gt)
    jax.block_until_ready(loss)

    ref = _focal_loss_ref(pred, gt)
    assert jnp.allclose(loss, ref, rtol=1e-5, atol=1e-5), (loss, ref)

    print("KERNEL_OK")
</pallas_src>

<mosaic_0001>
module attributes {stable_mosaic.version = 11 : i64} {
  func.func @_focal_loss_kernel(%arg0: i32, %arg1: memref<16x128xf32, #tpu.memory_space<vmem>>, %arg2: memref<16x128xf32, #tpu.memory_space<vmem>>, %arg3: memref<1x1x128xf32, #tpu.memory_space<vmem>>) attributes {dimension_semantics = [#tpu.dimension_semantics<parallel>], iteration_bounds = array<i64: 1>, scalar_prefetch = 0 : i64, scratch_operands = 0 : i64, tpu.core_type = #tpu.core_type<tc>, window_params = [{transform_indices = @transform_0, window_bounds = array<i64: 16, 128>}, {transform_indices = @transform_1, window_bounds = array<i64: 16, 128>}, {transform_indices = @transform_2, window_bounds = array<i64: 1, 1, 128>}]} {
    %c0 = arith.constant 0 : index
    %c0_0 = arith.constant 0 : index
    %0 = vector.load %arg1[%c0, %c0_0] : memref<16x128xf32, #tpu.memory_space<vmem>>, vector<16x128xf32>
    %c0_1 = arith.constant 0 : index
    %c0_2 = arith.constant 0 : index
    %1 = vector.load %arg2[%c0_1, %c0_2] : memref<16x128xf32, #tpu.memory_space<vmem>>, vector<16x128xf32>
    %cst = arith.constant 1.000000e+00 : f32
    %2 = vector.broadcast %cst : f32 to vector<16x128xf32>
    %3 = arith.cmpf oeq, %1, %2 : vector<16x128xf32>
    %cst_3 = arith.constant 1.000000e+00 : f32
    %4 = vector.broadcast %cst_3 : f32 to vector<16x128xf32>
    %5 = arith.subf %4, %0 : vector<16x128xf32>
    %6 = arith.select %3, %0, %5 : vector<16x128xi1>, vector<16x128xf32>
    %7 = math.log %6 : vector<16x128xf32>
    %cst_4 = arith.constant 1.000000e+00 : f32
    %8 = vector.broadcast %cst_4 : f32 to vector<16x128xf32>
    %9 = arith.subf %8, %0 : vector<16x128xf32>
    %cst_5 = arith.constant 1.000000e+00 : f32
    %10 = vector.broadcast %cst_5 : f32 to vector<16x128xf32>
    %11 = arith.subf %10, %1 : vector<16x128xf32>
    %12 = arith.mulf %11, %11 : vector<16x128xf32>
    %13 = arith.mulf %12, %12 : vector<16x128xf32>
    %14 = arith.mulf %9, %9 : vector<16x128xf32>
    %15 = arith.mulf %7, %14 : vector<16x128xf32>
    %16 = arith.mulf %0, %0 : vector<16x128xf32>
    %17 = arith.mulf %7, %16 : vector<16x128xf32>
    %18 = arith.mulf %17, %13 : vector<16x128xf32>
    %cst_6 = arith.constant 1.000000e+00 : f32
    %19 = vector.broadcast %cst_6 : f32 to vector<16x128xf32>
    %20 = arith.cmpf olt, %1, %19 : vector<16x128xf32>
    %cst_7 = arith.constant 0.000000e+00 : f32
    %21 = vector.broadcast %cst_7 : f32 to vector<16x128xf32>
    %22 = arith.select %20, %18, %21 : vector<16x128xi1>, vector<16x128xf32>
    %23 = arith.select %3, %15, %22 : vector<16x128xi1>, vector<16x128xf32>
    %24 = arith.extui %3 : vector<16x128xi1> to vector<16x128xi32>
    %25 = arith.sitofp %24 : vector<16x128xi32> to vector<16x128xf32>
    %26 = vector.shape_cast %23 : vector<16x128xf32> to vector<1x16x128xf32>
    %cst_8 = arith.constant dense<0.000000e+00> : vector<1xf32>
    %27 = vector.multi_reduction <add>, %26, %cst_8 [1, 2] : vector<1x16x128xf32> to vector<1xf32>
    %28 = vector.shape_cast %27 : vector<1xf32> to vector<1x1x1xf32>
    %29 = vector.extract %28[0, 0, 0] : f32 from vector<1x1x1xf32>
    %30 = vector.shape_cast %25 : vector<16x128xf32> to vector<1x16x128xf32>
    %cst_9 = arith.constant dense<0.000000e+00> : vector<1xf32>
    %31 = vector.multi_reduction <add>, %30, %cst_9 [1, 2] : vector<1x16x128xf32> to vector<1xf32>
    %32 = vector.shape_cast %31 : vector<1xf32> to vector<1x1x1xf32>
    %33 = vector.extract %32[0, 0, 0] : f32 from vector<1x1x1xf32>
    %34 = tpu.iota {dimensions = array<i32: 2>} : vector<1x1x128xi32>
    %c0_i32 = arith.constant 0 : i32
    %35 = vector.broadcast %c0_i32 : i32 to vector<1x1x128xi32>
    %36 = arith.cmpi eq, %34, %35 : vector<1x1x128xi32>
    %c1_i32 = arith.constant 1 : i32
    %37 = vector.broadcast %c1_i32 : i32 to vector<1x1x128xi32>
    %38 = arith.cmpi eq, %34, %37 : vector<1x1x128xi32>
    %cst_10 = arith.constant 0.000000e+00 : f32
    %39 = vector.broadcast %33 : f32 to vector<1x1x128xf32>
    %40 = vector.broadcast %cst_10 : f32 to vector<1x1x128xf32>
    %41 = arith.select %38, %39, %40 : vector<1x1x128xi1>, vector<1x1x128xf32>
    %42 = vector.broadcast %29 : f32 to vector<1x1x128xf32>
    %43 = arith.select %36, %42, %41 : vector<1x1x128xi1>, vector<1x1x128xf32>
    %c0_11 = arith.constant 0 : index
    %c0_12 = arith.constant 0 : index
    %c0_13 = arith.constant 0 : index
    %44 = vector.load %arg3[%c0_11, %c0_12, %c0_13] : memref<1x1x128xf32, #tpu.memory_space<vmem>>, vector<1x1x128xf32>
    tpu.vector_store %arg3[%c0_11, %c0_12, %c0_13], %43 {strides = array<i32>} : memref<1x1x128xf32, #tpu.memory_space<vmem>>, vector<1x1x128xf32>,
    return
  }
  func.func @transform_0(%arg0: i32) -> (i32, i32) {
    %c0_i32 = arith.constant 0 : i32
    %c0_i32_0 = arith.constant 0 : i32
    return %arg0, %c0_i32 : i32, i32
  }
  func.func @transform_1(%arg0: i32) -> (i32, i32) {
    %c0_i32 = arith.constant 0 : i32
    %c0_i32_0 = arith.constant 0 : i32
    return %arg0, %c0_i32 : i32, i32
  }
  func.func @transform_2(%arg0: i32) -> (i32, i32, i32) {
    %c0_i32 = arith.constant 0 : i32
    %c0_i32_0 = arith.constant 0 : i32
    %c0_i32_1 = arith.constant 0 : i32
    return %arg0, %c0_i32, %c0_i32_0 : i32, i32, i32
  }
}

</mosaic_0001>

<llo_original>
// kernel: focal_loss.1
$region0: #{focal_loss.1}
  #allocation0 [shape = 'u32[]', space=smem, size = 0x4, offset = 0x4, fixed_abs, tag = 'smem constant byte address 0x4 - core index']
  #allocation1 [shape = 'u32[144,128]{1,0:T(1,128)}', space=vmem, size = 0x12000, scoped, tag = 'internal scratch']
  %s0 = inlined_call_operand.vmem [shape: f32[16,128], index: 0, kind: input, shape index: {}]
  %s1 = inlined_call_operand.vmem [shape: f32[16,128], index: 1, kind: input, shape index: {}]
  %s2 = inlined_call_operand.vmem [shape: f32[1,1,128], index: 2, kind: output, shape index: {}]
  %s3 = sld [smem:[#allocation0]]
  $region18: #{focal_loss.1} parent=0
    _
  %s5 = ssub.s32 1, %s3
  %s6 = scalar_select 0, %s5, %s3
  // Predicated region
  $region2: #{focal_loss.1} parent=0 // pred_check
    _
  $region3: #{focal_loss.1} parent=0 // pred_check_branch
    %8 = sbr.rel (0) target = $region5
  $region4: #{focal_loss.1} parent=0 // pred_region
    _
  $region5: #{focal_loss.1} parent=0 // pred_fallthru
    _
  // Predicated region
  $region6: #{focal_loss.1} parent=0 // pred_check
    _
  $region7: #{focal_loss.1} parent=0 // pred_check_branch
    %10 = sbr.rel (0) target = $region9
  $region8: #{focal_loss.1} parent=0 // pred_region
    _
  $region9: #{focal_loss.1} parent=0 // pred_fallthru
    _
  %v11 = vld [vmem:[%s0] sm:$0xff]
  %v12 = vld [vmem:[%s0 + $0x8] sm:$0xff]
  %v13 = vld [vmem:[%s1] sm:$0xff]
  %v14 = vld [vmem:[%s1 + $0x8] sm:$0xff]
  %vm15 = vcmp.eq.f32.partialorder %v13, 1.0
  %vm16 = vcmp.eq.f32.partialorder %v14, 1.0
  %v17 = vsub.f32 1.0, %v11
  %v18 = vsub.f32 1.0, %v12
  %v19 = vsel %vm15, %v11, %v17
  %v20 = vsel %vm16, %v12, %v18
  %v21 = vlog2.pop %v19
  %v22 = vmul.f32 %v21, 0.6931472
  %v23 = vlog2.pop %v20
  %v24 = vmul.f32 %v23, 0.6931472
  %v25 = vsub.f32 1.0, %v13
  %v26 = vsub.f32 1.0, %v14
  %v27 = vmul.f32 %v25, %v25
  %v28 = vmul.f32 %v26, %v26
  %v29 = vmul.f32 %v27, %v27
  %v30 = vmul.f32 %v28, %v28
  %v31 = vmul.f32 %v17, %v17
  %v32 = vmul.f32 %v18, %v18
  %v33 = vmul.f32 %v22, %v31
  %v34 = vmul.f32 %v24, %v32
  %v35 = vmul.f32 %v11, %v11
  %v36 = vmul.f32 %v12, %v12
  %v37 = vmul.f32 %v22, %v35
  %v38 = vmul.f32 %v24, %v36
  %v39 = vmul.f32 %v37, %v29
  %v40 = vmul.f32 %v38, %v30
  %vm41 = vcmp.lt.f32.partialorder %v13, 1.0
  %vm42 = vcmp.lt.f32.partialorder %v14, 1.0
  %v43 = vsel %vm41, %v39, 0.0
  %v44 = vsel %vm42, %v40, 0.0
  %v45 = vsel %vm15, %v33, %v43
  %v46 = vsel %vm16, %v34, %v44
  %v47 = vsel %vm15, 1, 0
  %v48 = vsel %vm16, 1, 0
  %v49 = vcvt.s32.f32 %v47
  %v50 = vcvt.s32.f32 %v48
  %v51 = vadd.f32 %v45, %v46
  %52 = vadd.xlane.f32.xlu0 %v51
  %v53 = vpop.xlane.xlu0 %52
  %v54 = vrot.slane %v53, 4
  %v55 = vadd.f32 %v53, %v54
  %v56 = vrot.slane %v55, 2
  %v57 = vadd.f32 %v55, %v56
  %v58 = vrot.slane %v57, 1
  %v59 = vadd.f32 %v57, %v58
  %s60 = vtos %v59
  %v61 = vadd.f32 %v49, %v50
  %62 = vadd.xlane.f32.xlu0 %v61
  %v63 = vpop.xlane.xlu0 %62
  %v64 = vrot.slane %v63, 4
  %v65 = vadd.f32 %v63, %v64
  %v66 = vrot.slane %v65, 2
  %v67 = vadd.f32 %v65, %v66
  %v68 = vrot.slane %v67, 1
  %v69 = vadd.f32 %v67, %v68
  %s70 = vtos %v69
  %v71 = vlaneseq
  %v72 = vand.u32 %v71, 127
  %vm73 = vcmp.eq.s32.totalorder %v72, 0
  %vm74 = vcmp.eq.s32.totalorder %v72, 1
  %v75 = vstv %s70
  %v76 = vsel %vm74, %v75, 0.0
  %v77 = vstv %s60
  %v78 = vsel %vm73, %v77, %v76
  %79 = vst [vmem:[%s2] sm:$0x1] %v78
  // Predicated region
  $region10: #{focal_loss.1} parent=0 // pred_check
    _
  $region11: #{focal_loss.1} parent=0 // pred_check_branch
    %81 = sbr.rel (0) target = $region13
  $region12: #{focal_loss.1} parent=0 // pred_region
    _
  $region13: #{focal_loss.1} parent=0 // pred_fallthru
    _
  // Predicated region
  $region14: #{focal_loss.1} parent=0 // pred_check
    _
  $region15: #{focal_loss.1} parent=0 // pred_check_branch
    %83 = sbr.rel (0) target = $region17
  $region16: #{focal_loss.1} parent=0 // pred_region
    _
  $region17: #{focal_loss.1} parent=0 // pred_fallthru
    _

</llo_original>
